<compile_context>
chip_gen: v7x
topology: tpu7x:2x2x1
jax: 0.10.0
libtpu: 0.0.40
codegen_flags: <defaults>
</compile_context>

<pallas_src>
import functools

import jax
import jax.numpy as jnp
from jax.experimental import pallas as pl
from jax.experimental.pallas import tpu as pltpu


def _rope_kernel_full(pos_ref, theta_ref, out_ref, *, dim):
    # pos_ref:   (TILE, 1)   int32  -> positions
    # theta_ref: (1, dim)    f32    -> concat([theta, theta])
    # out_ref:   (TILE, 2*dim) f32  -> [cos | sin] along lanes
    pos = pos_ref[...].astype(jnp.float32)          # (TILE, 1)
    theta = theta_ref[...]                          # (1, dim)
    angles = pos * theta                            # (TILE, dim)
    out_ref[:, :dim] = jnp.cos(angles)
    out_ref[:, dim:] = jnp.sin(angles)


def _rope_kernel_dedup(pos_ref, theta_ref, out_ref, *, dim):
    # pos_ref:   (TILE, 1)      int32
    # theta_ref: (1, dim//2)    f32   -> theta (not duplicated)
    # out_ref:   (TILE, 2*dim)  f32   -> [cos | cos | sin | sin] along lanes
    half = dim // 2
    pos = pos_ref[...].astype(jnp.float32)          # (TILE, 1)
    theta = theta_ref[...]                          # (1, half)
    angles = pos * theta                            # (TILE, half)
    c = jnp.cos(angles)
    s = jnp.sin(angles)
    out_ref[:, :half] = c
    out_ref[:, half:dim] = c
    out_ref[:, dim:dim + half] = s
    out_ref[:, dim + half:] = s


def rotary_embedding_factory(input_positions, dim: int, base: int = 10000):
    """JAX/Pallas equivalent of RotaryEmbeddingFactory(dim, base)(input_positions).

    Args:
        input_positions: 1D integer array of positions (seq_len,)
        dim: head dimension (must be even)
        base: frequency base
    Returns:
        f32 array of shape (seq_len, 1, dim, 2); last axis = [cos, sin].
    """
    if input_positions.ndim != 1:
        raise ValueError(f"input_positions must be 1D, got {input_positions.ndim}D")
    if dim <= 0 or dim % 2 != 0:
        raise ValueError(f"dim must be positive and even, got {dim}")
    if base <= 0:
        raise ValueError(f"base must be positive, got {base}")

    seq_len = input_positions.shape[0]
    half = dim // 2

    # Precompute theta = base^(-2i/dim) for i in [0, dim/2)  (tiny; plain JAX glue).
    freq_indices = jnp.arange(0, dim, 2, dtype=jnp.float32)       # (dim/2,)
    theta = jnp.power(jnp.float32(base), -freq_indices / dim)     # (dim/2,)

    # De-duplicate transcendental work only when the half-width vregs stay full.
    use_dedup = half >= 128
    if use_dedup:
        theta_in = theta[None, :]                                  # (1, dim/2)
        kernel = functools.partial(_rope_kernel_dedup, dim=dim)
    else:
        theta_in = jnp.concatenate([theta, theta])[None, :]        # (1, dim)
        kernel = functools.partial(_rope_kernel_full, dim=dim)
    theta_width = theta_in.shape[1]

    pos2d = input_positions.astype(jnp.int32).reshape(seq_len, 1)  # (seq, 1)

    # Seq tiling: big enough to hide per-step overhead, small enough to
    # double-buffer comfortably in scoped VMEM on all generations.
    TILE = 512 if seq_len > 512 else seq_len                       # 512 % 8 == 0
    num_tiles = pl.cdiv(seq_len, TILE)

    n_trans = 2 * seq_len * theta_width
    cost = pl.CostEstimate(
        flops=seq_len * theta_width,                 # angle multiplies
        transcendentals=n_trans,                     # cos + sin
        bytes_accessed=(seq_len * 4                  # positions
                        + theta_width * 4            # theta
                        + seq_len * 2 * dim * 4),    # fused output slab
    )

    slab = pl.pallas_call(
        kernel,
        out_shape=jax.ShapeDtypeStruct((seq_len, 2 * dim), jnp.float32),
        grid=(num_tiles,),
        in_specs=[
            pl.BlockSpec((TILE, 1), lambda i: (i, 0)),             # positions
            pl.BlockSpec((1, theta_width), lambda i: (0, 0)),      # theta (resident)
        ],
        out_specs=pl.BlockSpec((TILE, 2 * dim), lambda i: (i, 0)),
        compiler_params=pltpu.CompilerParams(
            dimension_semantics=("parallel",),
        ),
        cost_estimate=cost,
    )(pos2d, theta_in)

    # Materialize the PyTorch layout [seq, 1, dim, 2] once in the wrapper.
    # slab = [cos_rep | sin_rep] along lanes -> (seq, 2, dim) -> (seq, dim, 2).
    # TODO(synk): if the downstream apply_rope consumer can take the (seq, 2*dim)
    # slab directly, skip this interleave and save one memory-bound XLA pass.
    pos_emb = jnp.transpose(slab.reshape(seq_len, 2, dim), (0, 2, 1))[:, None, :, :]
    return pos_emb


def _reference_jax(input_positions, dim, base=10000):
    positions = input_positions.astype(jnp.float32)
    freq_indices = jnp.arange(0, dim, 2, dtype=jnp.float32)
    theta = jnp.power(jnp.float32(base), -freq_indices / dim)
    angles = positions[:, None] * theta[None, :]
    cos = jnp.cos(angles)[:, None, :]
    sin = jnp.sin(angles)[:, None, :]
    cos_rep = jnp.concatenate([cos, cos], axis=-1)
    sin_rep = jnp.concatenate([sin, sin], axis=-1)
    return jnp.stack([cos_rep, sin_rep], axis=-1)


if __name__ == "__main__":
    seq_len = 8
    head_dim = 32
    base = 10000

    key = jax.random.PRNGKey(0)
    del key  # positions are deterministic by construction
    input_positions = jnp.arange(seq_len, dtype=jnp.int32)

    pos_emb = rotary_embedding_factory(input_positions, head_dim, base)
    pos_emb = jax.block_until_ready(pos_emb)

    assert pos_emb.shape == (seq_len, 1, head_dim, 2), pos_emb.shape
    assert pos_emb.dtype == jnp.float32, pos_emb.dtype

    ref = _reference_jax(input_positions, head_dim, base)
    assert jnp.allclose(pos_emb, ref, atol=1e-5, rtol=1e-5)

    # Also exercise the tiled + de-duplicated path (seq > TILE, dim/2 >= 128).
    seq_len2, head_dim2 = 1536, 256
    pos2 = jnp.arange(seq_len2, dtype=jnp.int32)
    pos_emb2 = jax.block_until_ready(rotary_embedding_factory(pos2, head_dim2, base))
    assert pos_emb2.shape == (seq_len2, 1, head_dim2, 2), pos_emb2.shape
    ref2 = _reference_jax(pos2, head_dim2, base)
    assert jnp.allclose(pos_emb2, ref2, atol=1e-5, rtol=1e-5)

    print("KERNEL_OK")
</pallas_src>

<mosaic_0001>
module attributes {stable_mosaic.version = 11 : i64} {
  func.func @_rope_kernel_full(%arg0: i32, %arg1: memref<8x1xi32, #tpu.memory_space<vmem>>, %arg2: memref<1x32xf32, #tpu.memory_space<vmem>>, %arg3: memref<8x64xf32, #tpu.memory_space<vmem>>) attributes {dimension_semantics = [#tpu.dimension_semantics<parallel>], iteration_bounds = array<i64: 1>, scalar_prefetch = 0 : i64, scratch_operands = 0 : i64, tpu.core_type = #tpu.core_type<tc>, window_params = [{transform_indices = @transform_0, window_bounds = array<i64: 8, 1>}, {pipeline_mode = #tpu.pipeline_mode<synchronous>, transform_indices = @transform_1, window_bounds = array<i64: 1, 32>}, {transform_indices = @transform_2, window_bounds = array<i64: 8, 64>}]} {
    %c0 = arith.constant 0 : index
    %c0_0 = arith.constant 0 : index
    %0 = vector.load %arg1[%c0, %c0_0] : memref<8x1xi32, #tpu.memory_space<vmem>>, vector<8x1xi32>
    %1 = arith.sitofp %0 : vector<8x1xi32> to vector<8x1xf32>
    %c0_1 = arith.constant 0 : index
    %c0_2 = arith.constant 0 : index
    %2 = vector.load %arg2[%c0_1, %c0_2] : memref<1x32xf32, #tpu.memory_space<vmem>>, vector<1x32xf32>
    %3 = vector.broadcast %1 : vector<8x1xf32> to vector<8x32xf32>
    %4 = vector.broadcast %2 : vector<1x32xf32> to vector<8x32xf32>
    %5 = arith.mulf %3, %4 : vector<8x32xf32>
    %6 = math.cos %5 : vector<8x32xf32>
    %c0_3 = arith.constant 0 : index
    %c0_4 = arith.constant 0 : index
    %7 = vector.load %arg3[%c0_3, %c0_4] : memref<8x64xf32, #tpu.memory_space<vmem>>, vector<8x32xf32>
    tpu.vector_store %arg3[%c0_3, %c0_4], %6 {strides = array<i32>} : memref<8x64xf32, #tpu.memory_space<vmem>>, vector<8x32xf32>,
    %8 = math.sin %5 : vector<8x32xf32>
    %c0_5 = arith.constant 0 : index
    %c32 = arith.constant 32 : index
    %9 = vector.load %arg3[%c0_5, %c32] : memref<8x64xf32, #tpu.memory_space<vmem>>, vector<8x32xf32>
    tpu.vector_store %arg3[%c0_5, %c32], %8 {strides = array<i32>} : memref<8x64xf32, #tpu.memory_space<vmem>>, vector<8x32xf32>,
    return
  }
  func.func @transform_0(%arg0: i32) -> (i32, i32) {
    %c0_i32 = arith.constant 0 : i32
    %c0_i32_0 = arith.constant 0 : i32
    return %arg0, %c0_i32 : i32, i32
  }
  func.func @transform_1(%arg0: i32) -> (i32, i32) {
    %c0_i32 = arith.constant 0 : i32
    %c0_i32_0 = arith.constant 0 : i32
    %c0_i32_1 = arith.constant 0 : i32
    return %c0_i32, %c0_i32_0 : i32, i32
  }
  func.func @transform_2(%arg0: i32) -> (i32, i32) {
    %c0_i32 = arith.constant 0 : i32
    %c0_i32_0 = arith.constant 0 : i32
    return %arg0, %c0_i32 : i32, i32
  }
}

</mosaic_0001>

<llo_original>
// kernel: tpu_custom_call.1
$region0: #{tpu_custom_call.1}
  #allocation0 [shape = 'u32[]', space=smem, size = 0x4, offset = 0x4, fixed_abs, tag = 'smem constant byte address 0x4 - core index']
  #allocation1 [shape = 'u32[144,128]{1,0:T(1,128)}', space=vmem, size = 0x12000, scoped, tag = 'internal scratch']
  %s0 = inlined_call_operand.vmem [shape: s32[8,1], index: 0, kind: input, shape index: {}]
  %s1 = inlined_call_operand.vmem [shape: f32[1,32], index: 1, kind: input, shape index: {}]
  %s2 = inlined_call_operand.hbm [shape: f32[8,64], index: 2, kind: output, shape index: {}]
  %s3 = sld [smem:[#allocation0]]
  $region18: #{tpu_custom_call.1} parent=0
    _
  %s5 = ssub.s32 1, %s3
  %s6 = scalar_select 0, %s5, %s3
  $region1: #{tpu_custom_call.1} parent=0
    #allocation2 [shape = 'u8[4096]{0}', space=vmem, size = 0x1000, scoped, tag = 'output window, operand 0, single buffered']
    #allocation3 [shape = 's32[1]{0}', space=sflag, size = 0x4, scoped, tag = 'scoped memory for tpu_custom_call.1']
    %7 = vsyncpa [#allocation3], 0
    // Predicated region
    $region2: #{tpu_custom_call.1} parent=1 // pred_check
      _
    $region3: #{tpu_custom_call.1} parent=1 // pred_check_branch
      %9 = sbr.rel (0) target = $region5
    $region4: #{tpu_custom_call.1} parent=1 // pred_region
      _
    $region5: #{tpu_custom_call.1} parent=1 // pred_fallthru
      _
    // Predicated region
    $region6: #{tpu_custom_call.1} parent=1 // pred_check
      _
    $region7: #{tpu_custom_call.1} parent=1 // pred_check_branch
      %11 = sbr.rel (0) target = $region9
    $region8: #{tpu_custom_call.1} parent=1 // pred_region
      _
    $region9: #{tpu_custom_call.1} parent=1 // pred_fallthru
      _
    %v12 = vld [vmem:[%s0] sm:$0xff]
    %v13 = vcvt.s32.f32 %v12
    %v14 = vld [vmem:[%s1] sm:$0x1]
    %16 = vset.pattern.permute.xlu0 0
    %17 = vperm.xlu0 %16, %v13
    %v18 = vpop.permute.xlu0 %17
    %v21 = vlaneseq
    %v22 = vshrl.u32 %v21, 7
    %v23 = vsub.s32 0, %v22
    %v24 = vrot.slane %v14, %v23
    %v26 = vmul.f32 %v18, %v24
    %v27 = vand.u32 2147483647, %v26
    %vm28 = vcmp.le.f32.partialorder %v27, 0.7853982
    %vm29 = vcmp.lt.s32.totalorder %v26, 0
    %v30 = vand.u32 %v26, 2139095040
    %v31 = vshrl.u32 %v30, 23
    %v32 = vsub.s32 %v31, 127
    %v33 = vand.u32 2147483647, %v26
    %v34 = vand.u32 %v33, 8388607
    %v35 = vor.u32 %v34, 8388608
    %v36 = vsub.s32 0, %v35
    %v37 = vadd.s32 %v32, 1
    %vm38 = vcmp.gt.s32.totalorder %v37, 0
    %v39 = vsel %vm38, %v37, 0
    %v40 = vshrl.u32 %v39, 5
    %v41 = vand.u32 %v39, 31
    %v42 = vsub.s32 32, %v41
    %v43 = vshrl.u32 683565275, %v42
    %v44 = vshll.u32 683565275, %v41
    %v45 = vshrl.u32 2475754826, %v42
    %v46 = vor.u32 %v44, %v45
    %v47 = vshll.u32 2475754826, %v41
    %v48 = vshrl.u32 2131351028, %v42
    %v49 = vor.u32 %v47, %v48
    %v50 = vshll.u32 2131351028, %v41
    %v51 = vshrl.u32 2102212464, %v42
    %v52 = vor.u32 %v50, %v51
    %v53 = vshll.u32 2102212464, %v41
    %v54 = vshrl.u32 920167782, %v42
    %v55 = vor.u32 %v53, %v54
    %v56 = vshll.u32 920167782, %v41
    %v57 = vshrl.u32 1326507024, %v42
    %v58 = vor.u32 %v56, %v57
    %vm59 = vcmp.lt.s32.totalorder %v40, 1
    %vm60 = vcmp.lt.s32.totalorder %v40, 2
    %vm61 = vcmp.lt.s32.totalorder %v40, 3
    %vm62 = vcmp.lt.s32.totalorder %v40, 4
    %v63 = vsel %vm59, %v43, %v46
    %v64 = vsel %vm62, %v52, 2102212464
    %v65 = vsel %vm61, %v49, %v64
    %v66 = vsel %vm60, %v63, %v65
    %v67 = vsel %vm59, %v46, %v49
    %v68 = vsel %vm62, %v55, 920167782
    %v69 = vsel %vm61, %v52, %v68
    %v70 = vsel %vm60, %v67, %v69
    %v71 = vsel %vm59, %v49, %v52
    %v72 = vsel %vm62, %v58, 1326507024
    %v73 = vsel %vm61, %v55, %v72
    %v74 = vsel %vm60, %v71, %v73
    %v75 = vshll.u32 %v35, 8
    %v76 = vmul.u32.u64.compose %v75, %v74
    %v77 = vextract.low.u32 %v76
    %v78 = vextract.high.u32 %v76
    %v79 = vmul.u32.u64.compose %v75, %v70
    %v80 = vextract.low.u32 %v79
    %v81 = vextract.high.u32 %v79
    %v82 = vmul.u32 %v75, %v66
    %v83 = vadd.s32 %v78, %v80
    %vm84 = vc.u32 %v78, %v80
    %v85 = vadd.s32 %v81, 1
    %v86 = vsel %vm84, %v85, %v81
    %v87 = vadd.s32 %v82, %v86
    %v88 = vadd.s32 %v87, 536870912
    %v89 = vshrl.u32 %v88, 30
    %v90 = vshll.u32 %v89, 30
    %v91 = vsub.s32 %v87, %v90
    %vm92 = vcmp.lt.s32.totalorder %v91, 0
    %v93 = vsub.s32 0, %v91
    %v94 = vsel %vm92, %v93, %v91
    %v95 = vclz %v94
    %v96 = vsub.s32 %v95, 2
    %vm97 = vcmp.gt.s32.totalorder 0, %v96
    %v98 = vsel %vm97, 0, %v96
    %v99 = vsub.s32 32, %v98
    %v100 = vshll.u32 %v91, %v98
    %v101 = vshrl.u32 %v83, %v99
    %v102 = vor.u32 %v100, %v101
    %v103 = vsub.s32 4294967266, %v98
    %v104 = vadd.s32 %v103, 127
    %v105 = vshll.u32 %v104, 23
    %v106 = vor.u32 4788187, %v105
    %v107 = vand.u32 2147483647, %v106
    %v109 = vcvt.s32.f32 %v102
    %v110 = vmul.f32 %v109, %v107
    %v111 = vxor.u32 %v110, 2147483648
    %v112 = vsel %vm29, %v111, %v110
    %v113 = vsub.s32 4, %v89
    %v114 = vsel %vm29, %v113, %v89
    %v115 = vsel %vm28, %v26, %v112
    %v116 = vsel %vm28, 0, %v114
    %v117 = vcosq.f32.pop %v115
    %v118 = vsinq.f32.pop %v115
    %vm119 = vweird.f32 %v26
    %v120 = vand.u32 %v116, 3
    %vm121 = vcmp.lt.s32.totalorder %v120, 2
    %vm122 = vcmp.eq.s32.totalorder %v120, 0
    %v123 = vxor.u32 %v118, 2147483648
    %v124 = vsel %vm122, %v117, %v123
    %vm125 = vcmp.eq.s32.totalorder %v120, 2
    %v126 = vxor.u32 %v117, 2147483648
    %v127 = vsel %vm125, %v126, %v118
    %v128 = vsel %vm121, %v124, %v127
    %v129 = vsel %vm119, nan, %v128
    %vm130 = vcmask 261120
    %131 = vst.msk [vmem:[#allocation2] sm:$0xff] %vm130, %v129
    %v132 = vand.u32 2147483647, %v26
    %vm133 = vcmp.le.f32.partialorder %v132, 0.7853982
    %vm134 = vcmp.lt.s32.totalorder %v26, 0
    %v135 = vand.u32 %v26, 2139095040
    %v136 = vshrl.u32 %v135, 23
    %v137 = vsub.s32 %v136, 127
    %v138 = vand.u32 2147483647, %v26
    %v139 = vand.u32 %v138, 8388607
    %v140 = vor.u32 %v139, 8388608
    %v141 = vsub.s32 0, %v140
    %v142 = vadd.s32 %v137, 1
    %vm143 = vcmp.gt.s32.totalorder %v142, 0
    %v144 = vsel %vm143, %v142, 0
    %v145 = vshrl.u32 %v144, 5
    %v146 = vand.u32 %v144, 31
    %v147 = vsub.s32 32, %v146
    %v148 = vshrl.u32 683565275, %v147
    %v149 = vshll.u32 683565275, %v146
    %v150 = vshrl.u32 2475754826, %v147
    %v151 = vor.u32 %v149, %v150
    %v152 = vshll.u32 2475754826, %v146
    %v153 = vshrl.u32 2131351028, %v147
    %v154 = vor.u32 %v152, %v153
    %v155 = vshll.u32 2131351028, %v146
    %v156 = vshrl.u32 2102212464, %v147
    %v157 = vor.u32 %v155, %v156
    %v158 = vshll.u32 2102212464, %v146
    %v159 = vshrl.u32 920167782, %v147
    %v160 = vor.u32 %v158, %v159
    %v161 = vshll.u32 920167782, %v146
    %v162 = vshrl.u32 1326507024, %v147
    %v163 = vor.u32 %v161, %v162
    %vm164 = vcmp.lt.s32.totalorder %v145, 1
    %vm165 = vcmp.lt.s32.totalorder %v145, 2
    %vm166 = vcmp.lt.s32.totalorder %v145, 3
    %vm167 = vcmp.lt.s32.totalorder %v145, 4
    %v168 = vsel %vm164, %v148, %v151
    %v169 = vsel %vm167, %v157, 2102212464
    %v170 = vsel %vm166, %v154, %v169
    %v171 = vsel %vm165, %v168, %v170
    %v172 = vsel %vm164, %v151, %v154
    %v173 = vsel %vm167, %v160, 920167782
    %v174 = vsel %vm166, %v157, %v173
    %v175 = vsel %vm165, %v172, %v174
    %v176 = vsel %vm164, %v154, %v157
    %v177 = vsel %vm167, %v163, 1326507024
    %v178 = vsel %vm166, %v160, %v177
    %v179 = vsel %vm165, %v176, %v178
    %v180 = vshll.u32 %v140, 8
    %v181 = vmul.u32.u64.compose %v180, %v179
    %v182 = vextract.low.u32 %v181
    %v183 = vextract.high.u32 %v181
    %v184 = vmul.u32.u64.compose %v180, %v175
    %v185 = vextract.low.u32 %v184
    %v186 = vextract.high.u32 %v184
    %v187 = vmul.u32 %v180, %v171
    %v188 = vadd.s32 %v183, %v185
    %vm189 = vc.u32 %v183, %v185
    %v190 = vadd.s32 %v186, 1
    %v191 = vsel %vm189, %v190, %v186
    %v192 = vadd.s32 %v187, %v191
    %v193 = vadd.s32 %v192, 536870912
    %v194 = vshrl.u32 %v193, 30
    %v195 = vshll.u32 %v194, 30
    %v196 = vsub.s32 %v192, %v195
    %vm197 = vcmp.lt.s32.totalorder %v196, 0
    %v198 = vsub.s32 0, %v196
    %v199 = vsel %vm197, %v198, %v196
    %v200 = vclz %v199
    %v201 = vsub.s32 %v200, 2
    %vm202 = vcmp.gt.s32.totalorder 0, %v201
    %v203 = vsel %vm202, 0, %v201
    %v204 = vsub.s32 32, %v203
    %v205 = vshll.u32 %v196, %v203
    %v206 = vshrl.u32 %v188, %v204
    %v207 = vor.u32 %v205, %v206
    %v208 = vsub.s32 4294967266, %v203
    %v209 = vadd.s32 %v208, 127
    %v210 = vshll.u32 %v209, 23
    %v211 = vor.u32 4788187, %v210
    %v212 = vand.u32 2147483647, %v211
    %v214 = vcvt.s32.f32 %v207
    %v215 = vmul.f32 %v214, %v212
    %v216 = vxor.u32 %v215, 2147483648
    %v217 = vsel %vm134, %v216, %v215
    %v218 = vsub.s32 4, %v194
    %v219 = vsel %vm134, %v218, %v194
    %v220 = vsel %vm133, %v26, %v217
    %v221 = vsel %vm133, 0, %v219
    %v222 = vcosq.f32.pop %v220
    %v223 = vsinq.f32.pop %v220
    %vm224 = vweird.f32 %v26
    %v225 = vadd.s32 %v221, 3
    %v226 = vand.u32 %v225, 3
    %vm227 = vcmp.lt.s32.totalorder %v226, 2
    %vm228 = vcmp.eq.s32.totalorder %v226, 0
    %v229 = vxor.u32 %v223, 2147483648
    %v230 = vsel %vm228, %v222, %v229
    %vm231 = vcmp.eq.s32.totalorder %v226, 2
    %v232 = vxor.u32 %v222, 2147483648
    %v233 = vsel %vm231, %v232, %v223
    %v234 = vsel %vm227, %v230, %v233
    %v235 = vsel %vm224, nan, %v234
    %237 = vrot.lane.b32.xlu0 %v235, 32
    %v238 = vpop.permute.xlu0 %237
    %vm240 = vcmask 523520
    %241 = vst.msk [vmem:[#allocation2] sm:$0xff] %vm240, %v238
    // Predicated region
    $region10: #{tpu_custom_call.1} parent=1 // pred_check
      _
    $region11: #{tpu_custom_call.1} parent=1 // pred_check_branch
      %243 = sbr.rel (0) target = $region13
    $region12: #{tpu_custom_call.1} parent=1 // pred_region
      %s245 = ssub.s32 128, 128
      %246 = vsyncadd [#allocation3], %s245
      %s248 = sshll.u32 [#allocation2], 4
      %s249 = int_to_ptr.vmem [resolvable:$true] %s248
      %251 = dma.vmem_to_hbm [thread:$0]  %s249, 128, %s2, [#allocation3]
    $region13: #{tpu_custom_call.1} parent=1 // pred_fallthru
      _
    // Predicated region
    $region14: #{tpu_custom_call.1} parent=1 // pred_check
      _
    $region15: #{tpu_custom_call.1} parent=1 // pred_check_branch
      %253 = sbr.rel (0) target = $region17
    $region16: #{tpu_custom_call.1} parent=1 // pred_region
      %254 = dma.done [#allocation3], 128
    $region17: #{tpu_custom_call.1} parent=1 // pred_fallthru
      _
    %255 = vsyncpa [#allocation3], 1

</llo_original>
